<compile_context>
chip_gen: v7x
topology: tpu7x:2x2x1
jax: 0.10.0
libtpu: 0.0.40
codegen_flags: <defaults>
</compile_context>

<pallas_src>
from functools import partial

import jax
import jax.numpy as jnp
from jax import lax
from jax.experimental import pallas as pl
from jax.experimental.pallas import tpu as pltpu


def _round_up(a, b):
    return -(-a // b) * b


def _conv_subsampling_kernel(xc_ref, wc_ref, bc_ref, wp_ref, bp_ref,
                             o_ref, acc_ref, *, n_chunks, mxu_dtype):
    """One (batch, time-tile) step: Conv2d(1->dim,3x3,s=2) + Swish + Linear."""
    f32 = jnp.float32
    xcat = xc_ref[...]                       # (tile_t, 3F), mxu_dtype

    acc_ref[...] = jnp.zeros_like(acc_ref)   # f32 projection accumulator

    def chunk(ci, carry):
        wc = wc_ref[ci]                      # (3F, FC*dim)   conv weight chunk
        bc = bc_ref[ci]                      # (1,  FC*dim)   conv bias chunk (f32)
        wp = wp_ref[ci]                      # (FC*dim, dim)  projection chunk
        # Conv2d(1 -> dim, 3x3, stride 2) as an implicit-im2col MXU GEMM.
        pre = jnp.dot(xcat, wc, preferred_element_type=f32) + bc
        # Swish: x * sigmoid(x).  exp and the approximate reciprocal both ride
        # the EUP slot; no VALU divide.
        h = pre * pl.reciprocal(1.0 + jnp.exp(-pre), approx=True)
        # Projection slice (rows f*dim+c of the reordered Linear weight).
        acc_ref[...] += jnp.dot(h.astype(mxu_dtype), wp,
                                preferred_element_type=f32)
        return carry

    lax.fori_loop(0, n_chunks, chunk, 0, unroll=min(2, n_chunks))

    o_ref[...] = (acc_ref[...] + bp_ref[...]).astype(o_ref.dtype)


def conv_subsampling(x, conv_w, conv_b, proj_w, proj_b, *,
                     tile_t=None, feat_chunk=8, mxu_dtype=jnp.bfloat16):
    """Pallas TPU forward of ConvSubsampling.

    x:      (B, T, F)
    conv_w: (dim, 1, 3, 3)    Conv2d(1, dim, 3, stride=2) weight
    conv_b: (dim,)
    proj_w: (dim, dim * Fp)   Linear weight, Fp = (F - 1) // 2
    proj_b: (dim,)
    returns (B, Tp, dim),     Tp = (T - 3) // 2 + 1
    """
    B, T, F = x.shape
    dim = conv_w.shape[0]
    Tp = (T - 3) // 2 + 1
    Fp = (F - 3) // 2 + 1                    # == (F - 1) // 2
    assert conv_w.shape == (dim, 1, 3, 3)
    assert conv_b.shape == (dim,)
    assert proj_w.shape == (dim, dim * Fp)
    assert proj_b.shape == (dim,)
    assert T >= 3 and F >= 3 and Tp >= 1 and Fp >= 1

    f32 = jnp.float32

    # ----- tiling choices -------------------------------------------------
    if tile_t is None:
        if Tp <= 8:
            tile_t = Tp                              # full extent (block == dim)
        else:
            tile_t = min(256, _round_up(Tp, 8))
            # v7x has 2 TensorCores: keep >= 2 parallel grid points when possible.
            if B * pl.cdiv(Tp, tile_t) < 2:
                tile_t = max(8, _round_up(pl.cdiv(Tp, 2), 8))
    n_t = pl.cdiv(Tp, tile_t)

    fc = max(1, min(feat_chunk, Fp))         # feature columns per chunk
    n_chunks = pl.cdiv(Fp, fc)
    fp_pad = n_chunks * fc                   # zero-padded feature count
    kc = 3 * F                               # conv GEMM contraction depth
    nc = fc * dim                            # per-chunk h width

    # ----- layout plumbing: im2col rows (wrapper side, tiny) --------------
    # xcat[b, t, i*F + g] = x[b, 2t + i, g]   for t in [0, Tp)
    xcat = jnp.concatenate(
        [x[:, 0:2 * Tp:2, :], x[:, 1:2 * Tp:2, :], x[:, 2:2 * Tp + 2:2, :]],
        axis=-1).astype(mxu_dtype)           # (B, Tp, 3F)

    # ----- weight prep (one-time, host/XLA side) ---------------------------
    # Banded conv weight: W_conv[i*F+g, f*dim+c] = conv_w[c, 0, i, g - 2f]
    w_ijc = conv_w.reshape(dim, 3, 3).transpose(1, 2, 0).astype(f32)   # (i, j, c)
    g_idx = jnp.arange(F)[:, None]                                     # (F, 1)
    f_idx = jnp.arange(fp_pad)[None, :]                                # (1, fp_pad)
    jj = g_idx - 2 * f_idx                                             # (F, fp_pad)
    valid = (jj >= 0) & (jj <= 2) & (f_idx < Fp)
    wc = jnp.where(valid[None, :, :, None],
                   w_ijc[:, jnp.clip(jj, 0, 2), :], 0.0)               # (3,F,fp_pad,dim)
    wc = wc.reshape(kc, fp_pad * dim)
    wc = wc.reshape(kc, n_chunks, nc).transpose(1, 0, 2).astype(mxu_dtype)

    # Conv bias replicated to the (f*dim + c) layout, zero on padded features.
    bc = jnp.tile(conv_b.astype(f32), (fp_pad,)) * \
        jnp.repeat((jnp.arange(fp_pad) < Fp).astype(f32), dim)
    bc = bc.reshape(n_chunks, 1, nc)

    # Projection weight reordered to rows (f*dim + c); PyTorch flattening of
    # the permuted (dim, Fp) conv activation is c*Fp + f.
    wp = proj_w.astype(f32).reshape(dim, dim, Fp).transpose(2, 1, 0)   # (f, c, d)
    wp = jnp.pad(wp, ((0, fp_pad - Fp), (0, 0), (0, 0)))
    wp = wp.reshape(fp_pad * dim, dim)
    wp = wp.reshape(n_chunks, nc, dim).astype(mxu_dtype)
    bp = proj_b.reshape(1, dim).astype(f32)

    # ----- VMEM budget / cost hint -----------------------------------------
    wbytes = jnp.dtype(mxu_dtype).itemsize
    obytes = jnp.dtype(x.dtype).itemsize
    need = (2 * (wc.size + wp.size) * wbytes            # weights (double-buffered)
            + 2 * (bc.size + bp.size) * 4
            + 2 * tile_t * kc * wbytes                  # xcat blocks
            + 2 * tile_t * dim * obytes                 # output blocks
            + tile_t * dim * 4                          # f32 accumulator scratch
            + 3 * tile_t * nc * 4)                      # pre / h transients
    vmem_limit = int(min(max(need * 5 // 4, 32 * 1024 * 1024), 56 * 1024 * 1024))

    cost = pl.CostEstimate(
        flops=int(2 * B * Tp * fp_pad * dim * (kc + dim)),
        transcendentals=int(B * Tp * fp_pad * dim),
        bytes_accessed=int(xcat.size * wbytes + (wc.size + wp.size) * wbytes
                           + (bc.size + bp.size) * 4 + B * Tp * dim * obytes),
    )

    kernel = partial(_conv_subsampling_kernel,
                     n_chunks=n_chunks, mxu_dtype=mxu_dtype)

    return pl.pallas_call(
        kernel,
        out_shape=jax.ShapeDtypeStruct((B, Tp, dim), x.dtype),
        grid=(B, n_t),
        in_specs=[
            pl.BlockSpec((None, tile_t, kc), lambda b, t: (b, t, 0)),    # xcat
            pl.BlockSpec((n_chunks, kc, nc), lambda b, t: (0, 0, 0)),    # conv W
            pl.BlockSpec((n_chunks, 1, nc), lambda b, t: (0, 0, 0)),     # conv b
            pl.BlockSpec((n_chunks, nc, dim), lambda b, t: (0, 0, 0)),   # proj W
            pl.BlockSpec((1, dim), lambda b, t: (0, 0)),                 # proj b
        ],
        out_specs=pl.BlockSpec((None, tile_t, dim), lambda b, t: (b, t, 0)),
        scratch_shapes=[pltpu.VMEM((tile_t, dim), jnp.float32)],
        compiler_params=pltpu.CompilerParams(
            dimension_semantics=("parallel", "parallel"),
            vmem_limit_bytes=vmem_limit),
        cost_estimate=cost,
    )(xcat, wc, bc, wp, bp)


def _reference(x, conv_w, conv_b, proj_w, proj_b):
    """Pure-JAX reference of the PyTorch ConvSubsampling forward."""
    hi = lax.Precision.HIGHEST
    y = lax.conv_general_dilated(
        x[:, None, :, :], conv_w, window_strides=(2, 2), padding="VALID",
        dimension_numbers=("NCHW", "OIHW", "NCHW"), precision=hi)
    y = y + conv_b[None, :, None, None]
    y = y * jax.nn.sigmoid(y)                      # Swish
    y = jnp.transpose(y, (0, 2, 1, 3))             # (B, Tp, dim, Fp)
    bs, tp, d, fp = y.shape
    y = y.reshape(bs, tp, d * fp)
    return jnp.einsum("btk,dk->btd", y, proj_w, precision=hi) + proj_b[None, None, :]


if __name__ == "__main__":
    # Small deterministic shapes consistent with the module's forward.
    batch, seq_len, n_feats, dim = 2, 18, 16, 32

    key = jax.random.PRNGKey(0)
    kx, kcw, kcb, kpw, kpb = jax.random.split(key, 5)

    f_out = (n_feats - 1) // 2
    x = jax.random.normal(kx, (batch, seq_len, n_feats), jnp.float32)
    conv_w = jax.random.normal(kcw, (dim, 1, 3, 3), jnp.float32) * 0.2
    conv_b = jax.random.normal(kcb, (dim,), jnp.float32) * 0.1
    proj_w = jax.random.normal(kpw, (dim, dim * f_out), jnp.float32) * 0.05
    proj_b = jax.random.normal(kpb, (dim,), jnp.float32) * 0.1

    t_out = (seq_len - 3) // 2 + 1
    y_ref = _reference(x, conv_w, conv_b, proj_w, proj_b)

    # f32 MXU path: validates the im2col/banded-weight math tightly
    # (tolerance absorbs only the EUP approximate-reciprocal sigmoid).
    y32 = conv_subsampling(x, conv_w, conv_b, proj_w, proj_b,
                           mxu_dtype=jnp.float32)
    y32 = jax.block_until_ready(y32)
    assert y32.shape == (batch, t_out, dim), y32.shape
    err32 = float(jnp.max(jnp.abs(y32 - y_ref)))
    assert err32 < 2e-3, f"f32 path max abs err = {err32}"

    # bf16 MXU path (default performance configuration).
    y16 = conv_subsampling(x, conv_w, conv_b, proj_w, proj_b)
    y16 = jax.block_until_ready(y16)
    assert y16.shape == (batch, t_out, dim), y16.shape
    err16 = float(jnp.max(jnp.abs(y16 - y_ref)))
    assert err16 < 5e-2, f"bf16 path max abs err = {err16}"

    print("KERNEL_OK")
</pallas_src>

<mosaic_0001>
module attributes {stable_mosaic.version = 11 : i64} {
  func.func @_conv_subsampling_kernel(%arg0: i32, %arg1: i32, %arg2: memref<1x8x48xf32, #tpu.memory_space<vmem>>, %arg3: memref<1x48x224xf32, #tpu.memory_space<vmem>>, %arg4: memref<1x1x224xf32, #tpu.memory_space<vmem>>, %arg5: memref<1x224x32xf32, #tpu.memory_space<vmem>>, %arg6: memref<1x32xf32, #tpu.memory_space<vmem>>, %arg7: memref<1x8x32xf32, #tpu.memory_space<vmem>>, %arg8: memref<8x32xf32, #tpu.memory_space<vmem>>) attributes {dimension_semantics = [#tpu.dimension_semantics<parallel>, #tpu.dimension_semantics<parallel>], iteration_bounds = array<i64: 2, 1>, scalar_prefetch = 0 : i64, scratch_operands = 1 : i64, tpu.core_type = #tpu.core_type<tc>, window_params = [{transform_indices = @transform_0, window_bounds = array<i64: 1, 8, 48>}, {pipeline_mode = #tpu.pipeline_mode<synchronous>, transform_indices = @transform_1, window_bounds = array<i64: 1, 48, 224>}, {pipeline_mode = #tpu.pipeline_mode<synchronous>, transform_indices = @transform_2, window_bounds = array<i64: 1, 1, 224>}, {pipeline_mode = #tpu.pipeline_mode<synchronous>, transform_indices = @transform_3, window_bounds = array<i64: 1, 224, 32>}, {pipeline_mode = #tpu.pipeline_mode<synchronous>, transform_indices = @transform_4, window_bounds = array<i64: 1, 32>}, {transform_indices = @transform_5, window_bounds = array<i64: 1, 8, 32>}]} {
    %c0 = arith.constant 0 : index
    %c0_0 = arith.constant 0 : index
    %c0_1 = arith.constant 0 : index
    %0 = vector.load %arg2[%c0, %c0_0, %c0_1] : memref<1x8x48xf32, #tpu.memory_space<vmem>>, vector<1x8x48xf32>
    %1 = vector.shape_cast %0 : vector<1x8x48xf32> to vector<8x48xf32>
    %cst = arith.constant 0.000000e+00 : f32
    %2 = vector.broadcast %cst : f32 to vector<8x32xf32>
    %c0_2 = arith.constant 0 : index
    %c0_3 = arith.constant 0 : index
    %3 = vector.load %arg8[%c0_2, %c0_3] : memref<8x32xf32, #tpu.memory_space<vmem>>, vector<8x32xf32>
    tpu.vector_store %arg8[%c0_2, %c0_3], %2 {strides = array<i32>} : memref<8x32xf32, #tpu.memory_space<vmem>>, vector<8x32xf32>,
    %c0_i32 = arith.constant 0 : i32
    %4 = arith.index_cast %c0_i32 : i32 to index
    %c0_4 = arith.constant 0 : index
    %c0_5 = arith.constant 0 : index
    %5 = vector.load %arg3[%4, %c0_4, %c0_5] : memref<1x48x224xf32, #tpu.memory_space<vmem>>, vector<1x48x224xf32>
    %6 = vector.shape_cast %5 : vector<1x48x224xf32> to vector<48x224xf32>
    %7 = arith.index_cast %c0_i32 : i32 to index
    %c0_6 = arith.constant 0 : index
    %c0_7 = arith.constant 0 : index
    %8 = vector.load %arg4[%7, %c0_6, %c0_7] : memref<1x1x224xf32, #tpu.memory_space<vmem>>, vector<1x1x224xf32>
    %9 = vector.shape_cast %8 : vector<1x1x224xf32> to vector<1x224xf32>
    %10 = arith.index_cast %c0_i32 : i32 to index
    %c0_8 = arith.constant 0 : index
    %c0_9 = arith.constant 0 : index
    %11 = vector.load %arg5[%10, %c0_8, %c0_9] : memref<1x224x32xf32, #tpu.memory_space<vmem>>, vector<1x224x32xf32>
    %12 = vector.shape_cast %11 : vector<1x224x32xf32> to vector<224x32xf32>
    %cst_10 = arith.constant dense<0.000000e+00> : vector<8x224xf32>
    %13 = tpu.matmul %1, %6, %cst_10 {dimension_numbers = #tpu.dot_dimension_numbers<[1], [0], [0], [1], [0, 0, 1, 1], [], []>} : vector<8x48xf32>, vector<48x224xf32>, vector<8x224xf32> -> vector<8x224xf32>
    %14 = vector.broadcast %9 : vector<1x224xf32> to vector<8x224xf32>
    %15 = arith.addf %13, %14 : vector<8x224xf32>
    %cst_11 = arith.constant 0.000000e+00 : f32
    %16 = vector.broadcast %cst_11 : f32 to vector<8x224xf32>
    %17 = arith.subf %16, %15 : vector<8x224xf32>
    %18 = math.exp %17 : vector<8x224xf32>
    %cst_12 = arith.constant 1.000000e+00 : f32
    %19 = vector.broadcast %cst_12 : f32 to vector<8x224xf32>
    %20 = arith.addf %19, %18 : vector<8x224xf32>
    %21 = tpu.reciprocal %20 {approx = true} : vector<8x224xf32> -> vector<8x224xf32>
    %22 = arith.mulf %15, %21 : vector<8x224xf32>
    %c0_13 = arith.constant 0 : index
    %c0_14 = arith.constant 0 : index
    %23 = vector.load %arg8[%c0_13, %c0_14] : memref<8x32xf32, #tpu.memory_space<vmem>>, vector<8x32xf32>
    %cst_15 = arith.constant dense<0.000000e+00> : vector<8x32xf32>
    %24 = tpu.matmul %22, %12, %cst_15 {dimension_numbers = #tpu.dot_dimension_numbers<[1], [0], [0], [1], [0, 0, 1, 1], [], []>} : vector<8x224xf32>, vector<224x32xf32>, vector<8x32xf32> -> vector<8x32xf32>
    %25 = arith.addf %23, %24 : vector<8x32xf32>
    %c0_16 = arith.constant 0 : index
    %c0_17 = arith.constant 0 : index
    %26 = vector.load %arg8[%c0_16, %c0_17] : memref<8x32xf32, #tpu.memory_space<vmem>>, vector<8x32xf32>
    tpu.vector_store %arg8[%c0_16, %c0_17], %25 {strides = array<i32>} : memref<8x32xf32, #tpu.memory_space<vmem>>, vector<8x32xf32>,
    %c1_i32 = arith.constant 1 : i32
    %c0_18 = arith.constant 0 : index
    %c0_19 = arith.constant 0 : index
    %27 = vector.load %arg8[%c0_18, %c0_19] : memref<8x32xf32, #tpu.memory_space<vmem>>, vector<8x32xf32>
    %c0_20 = arith.constant 0 : index
    %c0_21 = arith.constant 0 : index
    %28 = vector.load %arg6[%c0_20, %c0_21] : memref<1x32xf32, #tpu.memory_space<vmem>>, vector<1x32xf32>
    %29 = vector.broadcast %28 : vector<1x32xf32> to vector<8x32xf32>
    %30 = arith.addf %27, %29 : vector<8x32xf32>
    %c0_22 = arith.constant 0 : index
    %c0_23 = arith.constant 0 : index
    %c0_24 = arith.constant 0 : index
    %31 = vector.load %arg7[%c0_22, %c0_23, %c0_24] : memref<1x8x32xf32, #tpu.memory_space<vmem>>, vector<1x8x32xf32>
    %32 = vector.shape_cast %31 : vector<1x8x32xf32> to vector<8x32xf32>
    %33 = vector.shape_cast %30 : vector<8x32xf32> to vector<1x8x32xf32>
    tpu.vector_store %arg7[%c0_22, %c0_23, %c0_24], %33 {strides = array<i32>} : memref<1x8x32xf32, #tpu.memory_space<vmem>>, vector<1x8x32xf32>,
    return
  }
  func.func @transform_0(%arg0: i32, %arg1: i32) -> (i32, i32, i32) {
    %c0_i32 = arith.constant 0 : i32
    %c0_i32_0 = arith.constant 0 : i32
    return %arg0, %arg1, %c0_i32 : i32, i32, i32
  }
  func.func @transform_1(%arg0: i32, %arg1: i32) -> (i32, i32, i32) {
    %c0_i32 = arith.constant 0 : i32
    %c0_i32_0 = arith.constant 0 : i32
    %c0_i32_1 = arith.constant 0 : i32
    %c0_i32_2 = arith.constant 0 : i32
    return %c0_i32, %c0_i32_0, %c0_i32_1 : i32, i32, i32
  }
  func.func @transform_2(%arg0: i32, %arg1: i32) -> (i32, i32, i32) {
    %c0_i32 = arith.constant 0 : i32
    %c0_i32_0 = arith.constant 0 : i32
    %c0_i32_1 = arith.constant 0 : i32
    %c0_i32_2 = arith.constant 0 : i32
    return %c0_i32, %c0_i32_0, %c0_i32_1 : i32, i32, i32
  }
  func.func @transform_3(%arg0: i32, %arg1: i32) -> (i32, i32, i32) {
    %c0_i32 = arith.constant 0 : i32
    %c0_i32_0 = arith.constant 0 : i32
    %c0_i32_1 = arith.constant 0 : i32
    %c0_i32_2 = arith.constant 0 : i32
    return %c0_i32, %c0_i32_0, %c0_i32_1 : i32, i32, i32
  }
  func.func @transform_4(%arg0: i32, %arg1: i32) -> (i32, i32) {
    %c0_i32 = arith.constant 0 : i32
    %c0_i32_0 = arith.constant 0 : i32
    %c0_i32_1 = arith.constant 0 : i32
    return %c0_i32, %c0_i32_0 : i32, i32
  }
  func.func @transform_5(%arg0: i32, %arg1: i32) -> (i32, i32, i32) {
    %c0_i32 = arith.constant 0 : i32
    %c0_i32_0 = arith.constant 0 : i32
    return %arg0, %arg1, %c0_i32 : i32, i32, i32
  }
}

</mosaic_0001>

<llo_original>
// kernel: tpu_custom_call.1
$region0: #{tpu_custom_call.1}
  #allocation0 [shape = 'u32[]', space=smem, size = 0x4, offset = 0x4, fixed_abs, tag = 'smem constant byte address 0x4 - core index']
  #allocation1 [shape = 'u32[144,128]{1,0:T(1,128)}', space=vmem, size = 0x12000, scoped, tag = 'internal scratch']
  #allocation2 [shape = 'f32[8,32]{1,0:T(8,128)}', space=vmem, size = 0x1000, scoped, tag = 'scratch operand']
  %s0 = inlined_call_operand.vmem [shape: f32[2,8,48], index: 0, kind: input, shape index: {}]
  %s1 = inlined_call_operand.vmem [shape: f32[1,48,224], index: 1, kind: input, shape index: {}]
  %s2 = inlined_call_operand.vmem [shape: f32[1,1,224], index: 2, kind: input, shape index: {}]
  %s3 = inlined_call_operand.vmem [shape: f32[1,224,32], index: 3, kind: input, shape index: {}]
  %s4 = inlined_call_operand.vmem [shape: f32[1,32], index: 4, kind: input, shape index: {}]
  %s5 = inlined_call_operand.hbm [shape: f32[2,8,32], index: 5, kind: output, shape index: {}]
  %s6 = sld [smem:[#allocation0]]
  $region53: #{tpu_custom_call.1} parent=0
    _
  %s8 = ssub.s32 1, %s6
  %s9 = scalar_select 0, %s8, %s6
  $region1: #{tpu_custom_call.1} parent=0
    #allocation3 [shape = 'u8[8192]{0}', space=vmem, size = 0x2000, scoped, tag = 'output window, operand 0']
    #allocation4 [shape = 's32[2]{0}', space=sflag, size = 0x8, scoped, tag = 'scoped memory for tpu_custom_call.1']
    %10 = vsyncpa [#allocation4], 0
    %s11 = scalar_lea.sflag [#allocation4], 1
    %12 = vsyncpa %s11, 0
    loop: start=0, step=1, limit=4
    $region2: #{tpu_custom_call.1} parent=1 // loop_pre_header
      _
    $region3: #{tpu_custom_call.1} parent=1 // loop_header
      %s14 = sphi 0, %s18
      %p15 = scmp.ge.s32.totalorder %s14, 4
      %s21 = sphi 0, %s33
      %s22 = sphi 0, %s29
      %s23 = sphi 0, %s21
      %s24 = sphi 0, %s22
      %s25 = sphi 0, %s23
      %s26 = sphi 0, %s24
      %s38 = sphi 0, %s40
      %s41 = sphi 0, %s38
      %s42 = sphi 0, %s41
      %s58 = sphi 0, %s42
      %s62 = sphi 0, %s62
      %s64 = sphi 0, %s62
      %s65 = sphi 0, %s64
      %s79 = sphi 0, %s65
      %s83 = sphi 0, %s83
      %s85 = sphi 0, %s83
      %s86 = sphi 0, %s85
      %s100 = sphi 0, %s86
      %s104 = sphi 0, %s104
      %s106 = sphi 0, %s104
      %s107 = sphi 0, %s106
      %s121 = sphi 0, %s107
      %s125 = sphi 0, %s125
      %s127 = sphi 0, %s125
      %s128 = sphi 0, %s127
      %s142 = sphi 0, %s128
      %s150 = sphi 0, %s152
      %s153 = sphi 0, %s150
      %s154 = sphi 0, %s153
      %s170 = sphi 0, %s154
    $region4: #{tpu_custom_call.1} parent=1 // loop_header_branch
      %17 = sbr.rel (%p15) target = $region8
    $region5: #{tpu_custom_call.1} parent=1 // loop_body
      %s19 = ssub.s32 %s14, 1
      %s20 = ssub.s32 %s14, 2
      %s27 = sadd.s32 1, %s22
      %p28 = scmp.ge.s32.totalorder %s27, 1
      %s29 = scalar_select %p28, 0, %s27
      %s30 = sadd.s32 1, %s21
      %s31 = scalar_select %p28, %s30, %s21
      %p32 = scmp.ge.s32.totalorder %s31, 2
      %s33 = scalar_select %p32, 0, %s31
      %s34 = ssub.s32 %s21, %s33
      %s35 = ssub.s32 %s22, %s29
      %s36 = sor.u32 %s34, %s35
      %p37 = scmp.eq.s32.totalorder %s36, 0
      %s39 = sadd.s32 %s38, 1
      %s40 = scalar_select %p37, %s38, %s39
      %p43 = pneg %p37
      %p44 = scmp.eq.s32.totalorder %s14, 1
      %p45 = por %p43, %p44
      %p46 = scmp.ne.s32.totalorder %s38, %s41
      %p47 = scmp.eq.s32.totalorder %s14, 0
      %p48 = por %p46, %p47
      %p49 = scmp.ne.s32.totalorder %s38, %s41
      %p50 = scmp.eq.s32.totalorder %s19, 1
      %p51 = por %p49, %p50
      %p52 = scmp.ne.s32.totalorder %s41, %s42
      %p53 = scmp.eq.s32.totalorder %s19, 0
      %p54 = por %p52, %p53
      %p55 = scmp.ne.s32.totalorder %s41, %s42
      %p56 = scmp.eq.s32.totalorder %s20, 1
      %p57 = por %p55, %p56
      %p59 = scmp.ne.s32.totalorder %s42, %s58
      %p60 = scmp.eq.s32.totalorder %s20, 0
      %p61 = por %p59, %p60
      %s63 = sadd.s32 %s62, 1
      %p66 = scmp.eq.s32.totalorder %s14, 1
      %p67 = scmp.ne.s32.totalorder %s62, %s64
      %p68 = scmp.eq.s32.totalorder %s14, 0
      %p69 = por %p67, %p68
      %p70 = scmp.ne.s32.totalorder %s62, %s64
      %p71 = scmp.eq.s32.totalorder %s19, 1
      %p72 = por %p70, %p71
      %p73 = scmp.ne.s32.totalorder %s64, %s65
      %p74 = scmp.eq.s32.totalorder %s19, 0
      %p75 = por %p73, %p74
      %p76 = scmp.ne.s32.totalorder %s64, %s65
      %p77 = scmp.eq.s32.totalorder %s20, 1
      %p78 = por %p76, %p77
      %p80 = scmp.ne.s32.totalorder %s65, %s79
      %p81 = scmp.eq.s32.totalorder %s20, 0
      %p82 = por %p80, %p81
      %s84 = sadd.s32 %s83, 1
      %p87 = scmp.eq.s32.totalorder %s14, 1
      %p88 = scmp.ne.s32.totalorder %s83, %s85
      %p89 = scmp.eq.s32.totalorder %s14, 0
      %p90 = por %p88, %p89
      %p91 = scmp.ne.s32.totalorder %s83, %s85
      %p92 = scmp.eq.s32.totalorder %s19, 1
      %p93 = por %p91, %p92
      %p94 = scmp.ne.s32.totalorder %s85, %s86
      %p95 = scmp.eq.s32.totalorder %s19, 0
      %p96 = por %p94, %p95
      %p97 = scmp.ne.s32.totalorder %s85, %s86
      %p98 = scmp.eq.s32.totalorder %s20, 1
      %p99 = por %p97, %p98
      %p101 = scmp.ne.s32.totalorder %s86, %s100
      %p102 = scmp.eq.s32.totalorder %s20, 0
      %p103 = por %p101, %p102
      %s105 = sadd.s32 %s104, 1
      %p108 = scmp.eq.s32.totalorder %s14, 1
      %p109 = scmp.ne.s32.totalorder %s104, %s106
      %p110 = scmp.eq.s32.totalorder %s14, 0
      %p111 = por %p109, %p110
      %p112 = scmp.ne.s32.totalorder %s104, %s106
      %p113 = scmp.eq.s32.totalorder %s19, 1
      %p114 = por %p112, %p113
      %p115 = scmp.ne.s32.totalorder %s106, %s107
      %p116 = scmp.eq.s32.totalorder %s19, 0
      %p117 = por %p115, %p116
      %p118 = scmp.ne.s32.totalorder %s106, %s107
      %p119 = scmp.eq.s32.totalorder %s20, 1
      %p120 = por %p118, %p119
      %p122 = scmp.ne.s32.totalorder %s107, %s121
      %p123 = scmp.eq.s32.totalorder %s20, 0
      %p124 = por %p122, %p123
      %s126 = sadd.s32 %s125, 1
      %p129 = scmp.eq.s32.totalorder %s14, 1
      %p130 = scmp.ne.s32.totalorder %s125, %s127
      %p131 = scmp.eq.s32.totalorder %s14, 0
      %p132 = por %p130, %p131
      %p133 = scmp.ne.s32.totalorder %s125, %s127
      %p134 = scmp.eq.s32.totalorder %s19, 1
      %p135 = por %p133, %p134
      %p136 = scmp.ne.s32.totalorder %s127, %s128
      %p137 = scmp.eq.s32.totalorder %s19, 0
      %p138 = por %p136, %p137
      %p139 = scmp.ne.s32.totalorder %s127, %s128
      %p140 = scmp.eq.s32.totalorder %s20, 1
      %p141 = por %p139, %p140
      %p143 = scmp.ne.s32.totalorder %s128, %s142
      %p144 = scmp.eq.s32.totalorder %s20, 0
      %p145 = por %p143, %p144
      %s146 = ssub.s32 %s21, %s33
      %s147 = ssub.s32 %s22, %s29
      %s148 = sor.u32 %s146, %s147
      %p149 = scmp.eq.s32.totalorder %s148, 0
      %s151 = sadd.s32 %s150, 1
      %s152 = scalar_select %p149, %s150, %s151
      %p155 = pneg %p149
      %p156 = scmp.eq.s32.totalorder %s14, 1
      %p157 = por %p155, %p156
      %p158 = scmp.ne.s32.totalorder %s150, %s153
      %p159 = scmp.eq.s32.totalorder %s14, 0
      %p160 = por %p158, %p159
      %p161 = scmp.ne.s32.totalorder %s150, %s153
      %p162 = scmp.eq.s32.totalorder %s19, 1
      %p163 = por %p161, %p162
      %p164 = scmp.ne.s32.totalorder %s153, %s154
      %p165 = scmp.eq.s32.totalorder %s19, 0
      %p166 = por %p164, %p165
      %p167 = scmp.ne.s32.totalorder %s153, %s154
      %p168 = scmp.eq.s32.totalorder %s20, 1
      %p169 = por %p167, %p168
      %p171 = scmp.ne.s32.totalorder %s154, %s170
      %p172 = scmp.eq.s32.totalorder %s20, 0
      %p173 = por %p171, %p172
      %p174 = scmp.le.s32.totalorder 1, %s14
      %p175 = scmp.lt.s32.totalorder %s14, 3
      %p176 = pnand %p174, %p175
      %p177 = pneg %p176
      // Predicated region
      $region9: #{tpu_custom_call.1} parent=5 // pred_check
        _
      $region10: #{tpu_custom_call.1} parent=5 // pred_check_branch
        %179 = sbr.rel (%p176) target = $region12
      $region11: #{tpu_custom_call.1} parent=5 // pred_region
        %s180 = ssub.s32 %s14, 1
        // Predicated region
        $region13: #{tpu_custom_call.1} parent=11 // pred_check
          %p181 = pneg %p75
        $region14: #{tpu_custom_call.1} parent=11 // pred_check_branch
          %183 = sbr.rel (%p181) target = $region16
        $region15: #{tpu_custom_call.1} parent=11 // pred_region
          _
        $region16: #{tpu_custom_call.1} parent=11 // pred_fallthru
          _
        // Predicated region
        $region17: #{tpu_custom_call.1} parent=11 // pred_check
          %p184 = pneg %p96
        $region18: #{tpu_custom_call.1} parent=11 // pred_check_branch
          %186 = sbr.rel (%p184) target = $region20
        $region19: #{tpu_custom_call.1} parent=11 // pred_region
          _
        $region20: #{tpu_custom_call.1} parent=11 // pred_fallthru
          _
        // Predicated region
        $region21: #{tpu_custom_call.1} parent=11 // pred_check
          %p187 = pneg %p117
        $region22: #{tpu_custom_call.1} parent=11 // pred_check_branch
          %189 = sbr.rel (%p187) target = $region24
        $region23: #{tpu_custom_call.1} parent=11 // pred_region
          _
        $region24: #{tpu_custom_call.1} parent=11 // pred_fallthru
          _
        // Predicated region
        $region25: #{tpu_custom_call.1} parent=11 // pred_check
          %p190 = pneg %p138
        $region26: #{tpu_custom_call.1} parent=11 // pred_check_branch
          %192 = sbr.rel (%p190) target = $region28
        $region27: #{tpu_custom_call.1} parent=11 // pred_region
          _
        $region28: #{tpu_custom_call.1} parent=11 // pred_fallthru
          _
      $region12: #{tpu_custom_call.1} parent=5 // pred_fallthru
        _
      %p193 = scmp.lt.s32.totalorder %s14, 2
      // Predicated region
      $region29: #{tpu_custom_call.1} parent=5 // pred_check
        %p194 = pneg %p193
      $region30: #{tpu_custom_call.1} parent=5 // pred_check_branch
        %196 = sbr.rel (%p194) target = $region32
      $region31: #{tpu_custom_call.1} parent=5 // pred_region
        // Predicated region
        $region33: #{tpu_custom_call.1} parent=31 // pred_check
          %p197 = pneg %p48
        $region34: #{tpu_custom_call.1} parent=31 // pred_check_branch
          %199 = sbr.rel (%p197) target = $region36
        $region35: #{tpu_custom_call.1} parent=31 // pred_region
          %p200 = scmp.lt.s32.totalorder %s21, 1
          %s201 = scalar_select %p200, %s21, 1
          %p202 = scmp.lt.s32.totalorder %s22, 0
          %s203 = scalar_select %p202, %s22, 0
          %s204 = sadd.s32 %s203, %s201
          %s205 = smul.addr %s204, 8
          %s206 = scalar_lea.vmem %s0, %s205
        $region36: #{tpu_custom_call.1} parent=31 // pred_fallthru
          _
      $region32: #{tpu_custom_call.1} parent=5 // pred_fallthru
        _
      %p207 = scmp.le.s32.totalorder 1, %s14
      %p208 = scmp.lt.s32.totalorder %s14, 3
      %p209 = pnand %p207, %p208
      %p210 = pneg %p209
      // Predicated region
      $region37: #{tpu_custom_call.1} parent=5 // pred_check
        _
      $region38: #{tpu_custom_call.1} parent=5 // pred_check_branch
        %212 = sbr.rel (%p209) target = $region40
      $region39: #{tpu_custom_call.1} parent=5 // pred_region
        %s213 = ssub.s32 %s14, 1
        %p214 = scmp.lt.s32.totalorder %s23, 1
        %s215 = scalar_select %p214, %s23, 1
        %p216 = scmp.lt.s32.totalorder %s24, 0
        %s217 = scalar_select %p216, %s24, 0
        %s218 = sadd.s32 %s217, %s215
        %s219 = smul.addr %s218, 8
        %s220 = scalar_lea.vmem %s0, %s219
        %p221 = pneg %p54
        %p222 = pneg %p51
        %p223 = pneg %p75
        %p224 = pneg %p72
        %p225 = pneg %p96
        %p226 = pneg %p93
        %p227 = pneg %p117
        %p228 = pneg %p114
        %p229 = pneg %p138
        %p230 = pneg %p135
        %p231 = pneg %p166
        %p232 = pneg %p163
        %s233 = sand.u32 %s153, 1
        %s234 = scalar_lea.sflag [#allocation4], %s233
        %s235 = sand.u32 %s153, 1
        %s236 = smul.addr %s235, 8
        %s237 = scalar_lea.vmem [#allocation3], %s236
        %p238 = scmp.lt.s32.totalorder %s23, 1
        %s239 = scalar_select %p238, %s23, 1
        %p240 = scmp.lt.s32.totalorder %s24, 0
        %s241 = scalar_select %p240, %s24, 0
        %s242 = sadd.s32 %s241, %s239
        %s243 = smul.addr %s242, 8
        %s244 = scalar_lea.vmem %s0, %s243
        %v245 = vld [vmem:[%s244] sm:$0xff]
        %vm246 = vcmask 261120
        %247 = vst.msk [vmem:[#allocation2] sm:$0xff] %vm246, 0.0
        %v248 = vld [vmem:[%s1] sm:$0xff]
        %v249 = vld [vmem:[%s1 + $0x8] sm:$0xff]
        %v250 = vld [vmem:[%s1 + $0x10] sm:$0xff]
        %v251 = vld [vmem:[%s1 + $0x18] sm:$0xff]
        %v252 = vld [vmem:[%s1 + $0x20] sm:$0xff]
        %v253 = vld [vmem:[%s1 + $0x28] sm:$0xff]
        %v254 = vld [vmem:[%s1 + $0x30] sm:$0xff]
        %v255 = vld [vmem:[%s1 + $0x38] sm:$0xff]
        %v256 = vld [vmem:[%s1 + $0x40] sm:$0xff]
        %v257 = vld [vmem:[%s1 + $0x48] sm:$0xff]
        %v258 = vld [vmem:[%s1 + $0x50] sm:$0xff]
        %v259 = vld [vmem:[%s1 + $0x58] sm:$0xff]
        %v260 = vld [vmem:[%s2] sm:$0x3]
        %v261 = vld [vmem:[%s3] sm:$0xff]
        %v262 = vld [vmem:[%s3 + $0x8] sm:$0xff]
        %v263 = vld [vmem:[%s3 + $0x10] sm:$0xff]
        %v264 = vld [vmem:[%s3 + $0x18] sm:$0xff]
        %v265 = vld [vmem:[%s3 + $0x20] sm:$0xff]
        %v266 = vld [vmem:[%s3 + $0x28] sm:$0xff]
        %v267 = vld [vmem:[%s3 + $0x30] sm:$0xff]
        %v268 = vld [vmem:[%s3 + $0x38] sm:$0xff]
        %v269 = vld [vmem:[%s3 + $0x40] sm:$0xff]
        %v270 = vld [vmem:[%s3 + $0x48] sm:$0xff]
        %v271 = vld [vmem:[%s3 + $0x50] sm:$0xff]
        %v272 = vld [vmem:[%s3 + $0x58] sm:$0xff]
        %v273 = vld [vmem:[%s3 + $0x60] sm:$0xff]
        %v274 = vld [vmem:[%s3 + $0x68] sm:$0xff]
        %v275 = vld [vmem:[%s3 + $0x70] sm:$0xff]
        %v276 = vld [vmem:[%s3 + $0x78] sm:$0xff]
        %v277 = vld [vmem:[%s3 + $0x80] sm:$0xff]
        %v278 = vld [vmem:[%s3 + $0x88] sm:$0xff]
        %v279 = vld [vmem:[%s3 + $0x90] sm:$0xff]
        %v280 = vld [vmem:[%s3 + $0x98] sm:$0xff]
        %v281 = vld [vmem:[%s3 + $0xa0] sm:$0xff]
        %v282 = vld [vmem:[%s3 + $0xa8] sm:$0xff]
        %v283 = vld [vmem:[%s3 + $0xb0] sm:$0xff]
        %v284 = vld [vmem:[%s3 + $0xb8] sm:$0xff]
        %v285 = vld [vmem:[%s3 + $0xc0] sm:$0xff]
        %v286 = vld [vmem:[%s3 + $0xc8] sm:$0xff]
        %v287 = vld [vmem:[%s3 + $0xd0] sm:$0xff]
        %v288 = vld [vmem:[%s3 + $0xd8] sm:$0xff]
        %v290 = vlaneseq
        %v291 = vshrl.u32 %v290, 7
        %v292 = vsub.s32 0, %v291
        %v293 = vrot.slane %v260, %v292
        %v294 = vlaneseq
        %v295 = vshrl.u32 %v294, 7
        %v296 = vsub.s32 1, %v295
        %v297 = vrot.slane %v260, %v296
        %vm300 = vcmask 392192
        %v302 = vsel %vm300, %v245, 0
        %304 = vmatprep.subr.mxu0 %v249
        %305 = vmatpush1.msra.mxu0 %v248
        %306 = vmatprep.subr.mxu0 %v251
        %307 = vmatpush1.msra.mxu0 %v250
        %308 = vmatprep.subr.mxu0 %v253
        %309 = vmatpush1.msra.mxu0 %v252
        %310 = vmatprep.subr.mxu0 %v255
        %311 = vmatpush1.msra.mxu0 %v254
        %312 = vmatprep.subr.mxu0 %v257
        %313 = vmatpush1.msra.mxu0 %v256
        %314 = vmatprep.subr.mxu0 %v259
        %315 = vmatpush1.msra.mxu0 %v258
        %316 = vmatprep.subr.mxu0 0.0
        %317 = vmatpush1.msra.mxu0 0.0
        %318 = vmatprep.subr.mxu0 0.0
        %319 = vmatpush1.msra.mxu0 0.0
        %320 = vmatprep.subr.mxu0 0.0
        %321 = vmatpush1.msra.mxu0 0.0
        %322 = vmatprep.subr.mxu0 0.0
        %323 = vmatpush1.msra.mxu0 0.0
        %324 = vmatprep.subr.mxu0 0.0
        %325 = vmatpush1.msra.mxu0 0.0
        %326 = vmatprep.subr.mxu0 0.0
        %327 = vmatpush1.msra.mxu0 0.0
        %328 = vmatprep.subr.mxu0 0.0
        %329 = vmatpush1.msra.mxu0 0.0
        %330 = vmatprep.subr.mxu0 0.0
        %331 = vmatpush1.msra.mxu0 0.0
        %332 = vmatprep.subr.mxu0 0.0
        %333 = vmatpush1.msra.mxu0 0.0
        %334 = vmatprep.subr.mxu0 0.0
        %335 = vmatpush1.msra.mxu0 0.0
        %336 = vmatprep.subr.mxu0 0.0
        %337 = vmatpush1.msra.mxu0 0.0
        %338 = vmatprep.subr.mxu0 0.0
        %339 = vmatpush1.msra.mxu0 0.0
        %340 = vmatprep.subr.mxu0 0.0
        %341 = vmatpush1.msra.mxu0 0.0
        %342 = vmatprep.subr.mxu0 0.0
        %343 = vmatpush1.msra.mxu0 0.0
        %344 = vmatprep.subr.mxu0 0.0
        %345 = vmatpush1.msra.mxu0 0.0
        %346 = vmatprep.subr.mxu0 0.0
        %347 = vmatpush1.msra.mxu0 0.0
        %348 = vmatprep.subr.mxu0 0.0
        %349 = vmatpush1.msra.mxu0 0.0
        %350 = vmatprep.subr.mxu0 0.0
        %351 = vmatpush1.msra.mxu0 0.0
        %352 = vmatprep.subr.mxu0 0.0
        %353 = vmatpush1.msra.mxu0 0.0
        %354 = vmatprep.subr.mxu0 0.0
        %355 = vmatpush1.msra.mxu0 0.0
        %356 = vmatprep.subr.mxu0 0.0
        %357 = vmatpush1.msra.mxu0 0.0
        %358 = vmatprep.subr.mxu0 0.0
        %359 = vmatpush1.msra.mxu0 0.0
        %360 = vmatprep.subr.mxu0 0.0
        %361 = vmatpush1.msra.mxu0 0.0
        %362 = vmatprep.subr.mxu0 0.0
        %363 = vmatpush1.msra.mxu0 0.0
        %364 = vmatprep.subr.mxu0 0.0
        %365 = vmatpush1.msra.mxu0 0.0
        %366 = vmatprep.subr.mxu0 0.0
        %367 = vmatpush1.msra.mxu0 0.0
        %368 = vmatprep.mubr.f32.mxu0 0.0
        %369 = vmatmul.mubr.f32.gmra.mrb[0].mxu0 %v302
        %v370 = vpop.f32.mrb[0].mxu0
        %v371 = vadd.f32 %v293, %v370
        %v372 = vpop.f32.mrb[0].mxu0
        %v373 = vadd.f32 %v297, %v372
        %374 = vdwg.mxu0
        %v375 = vsub.f32 0.0, %v371
        %v376 = vsub.f32 0.0, %v373
        %v377 = vmul.f32 %v375, 1.442695
        %v378 = vpow.pop %v377
        %v379 = vmul.f32 %v376, 1.442695
        %v380 = vpow.pop %v379
        %v381 = vadd.f32 %v378, 1.0
        %v382 = vadd.f32 %v380, 1.0
        %v383 = vrcp.pop %v381
        %v384 = vrcp.pop %v382
        %v385 = vmul.f32 %v371, %v383
        %v386 = vmul.f32 %v373, %v384
        %v387 = vld [vmem:[#allocation2] sm:$0xff]
        %vm388 = vcmask 785408
        %v390 = vsel %vm388, %v386, 0
        %392 = vmatprep.subr.mxu0 0.0
        %393 = vmatpush1.msra.mxu0 %v261
        %394 = vmatprep.subr.mxu0 0.0
        %395 = vmatpush1.msra.mxu0 %v262
        %396 = vmatprep.subr.mxu0 0.0
        %397 = vmatpush1.msra.mxu0 %v263
        %398 = vmatprep.subr.mxu0 0.0
        %399 = vmatpush1.msra.mxu0 %v264
        %400 = vmatprep.subr.mxu0 0.0
        %401 = vmatpush1.msra.mxu0 %v265
        %402 = vmatprep.subr.mxu0 0.0
        %403 = vmatpush1.msra.mxu0 %v266
        %404 = vmatprep.subr.mxu0 0.0
        %405 = vmatpush1.msra.mxu0 %v267
        %406 = vmatprep.subr.mxu0 0.0
        %407 = vmatpush1.msra.mxu0 %v268
        %408 = vmatprep.subr.mxu0 0.0
        %409 = vmatpush1.msra.mxu0 %v269
        %410 = vmatprep.subr.mxu0 0.0
        %411 = vmatpush1.msra.mxu0 %v270
        %412 = vmatprep.subr.mxu0 0.0
        %413 = vmatpush1.msra.mxu0 %v271
        %414 = vmatprep.subr.mxu0 0.0
        %415 = vmatpush1.msra.mxu0 %v272
        %416 = vmatprep.subr.mxu0 0.0
        %417 = vmatpush1.msra.mxu0 %v273
        %418 = vmatprep.subr.mxu0 0.0
        %419 = vmatpush1.msra.mxu0 %v274
        %420 = vmatprep.subr.mxu0 0.0
        %421 = vmatpush1.msra.mxu0 %v275
        %422 = vmatprep.subr.mxu0 0.0
        %423 = vmatpush1.msra.mxu0 %v276
        %424 = vmatprep.subr.mxu0 0.0
        %425 = vmatpush1.msra.mxu0 %v277
        %426 = vmatprep.subr.mxu0 0.0
        %427 = vmatpush1.msra.mxu0 %v278
        %428 = vmatprep.subr.mxu0 0.0
        %429 = vmatpush1.msra.mxu0 %v279
        %430 = vmatprep.subr.mxu0 0.0
        %431 = vmatpush1.msra.mxu0 %v280
        %432 = vmatprep.subr.mxu0 0.0
        %433 = vmatpush1.msra.mxu0 %v281
        %434 = vmatprep.subr.mxu0 0.0
        %435 = vmatpush1.msra.mxu0 %v282
        %436 = vmatprep.subr.mxu0 0.0
        %437 = vmatpush1.msra.mxu0 %v283
        %438 = vmatprep.subr.mxu0 0.0
        %439 = vmatpush1.msra.mxu0 %v284
        %440 = vmatprep.subr.mxu0 0.0
        %441 = vmatpush1.msra.mxu0 %v285
        %442 = vmatprep.subr.mxu0 0.0
        %443 = vmatpush1.msra.mxu0 %v286
        %444 = vmatprep.subr.mxu0 0.0
        %445 = vmatpush1.msra.mxu0 %v287
        %446 = vmatprep.subr.mxu0 0.0
        %447 = vmatpush1.msra.mxu0 %v288
        %448 = vmatprep.subr.mxu0 0.0
        %449 = vmatpush1.msra.mxu0 0.0
        %450 = vmatprep.subr.mxu0 0.0
        %451 = vmatpush1.msra.mxu0 0.0
        %452 = vmatprep.subr.mxu0 0.0
        %453 = vmatpush1.msra.mxu0 0.0
        %454 = vmatprep.subr.mxu0 0.0
        %455 = vmatpush1.msra.mxu0 0.0
        %456 = vmatprep.mubr.f32.mxu0 %v390
        %457 = vmatmul.mubr.f32.gmra.mrb[0].mxu0 %v385
        %v458 = vpop.f32.mrb[0].mxu0
        %v459 = vadd.f32 0.0, %v458
        %v460 = vpop.f32.mrb[0].mxu0
        %461 = vdwg.mxu0
        %v462 = vadd.f32 %v387, %v459
        %463 = vst.msk [vmem:[#allocation2] sm:$0xff] %vm246, %v462
        %v464 = vld [vmem:[#allocation2] sm:$0xff]
        %v465 = vld [vmem:[%s4] sm:$0x1]
        %v467 = vlaneseq
        %v468 = vshrl.u32 %v467, 7
        %v469 = vsub.s32 0, %v468
        %v470 = vrot.slane %v465, %v469
        %v472 = vadd.f32 %v464, %v470
        %473 = vst.msk [vmem:[%s237] sm:$0xff] %vm246, %v472
        %s474 = sand.u32 %s153, 1
        %s475 = scalar_lea.sflag [#allocation4], %s474
        %s476 = sand.u32 %s153, 1
        %s477 = smul.addr %s476, 8
        %s478 = scalar_lea.vmem [#allocation3], %s477
        // Predicated region
        $region41: #{tpu_custom_call.1} parent=39 // pred_check
          %p479 = pneg %p163
        $region42: #{tpu_custom_call.1} parent=39 // pred_check_branch
          %481 = sbr.rel (%p479) target = $region44
        $region43: #{tpu_custom_call.1} parent=39 // pred_region
          %s483 = ssub.s32 128, 128
          %484 = vsyncadd %s475, %s483
          %s485 = sadd.s32 %s24, %s23
          %s486 = smul.addr %s485, 128
          %s487 = scalar_lea.hbm %s5, %s486
          %s489 = sshll.u32 %s478, 4
          %s490 = int_to_ptr.vmem [resolvable:$true] %s489
          %492 = dma.vmem_to_hbm [thread:$0]  %s490, 128, %s487, %s475
        $region44: #{tpu_custom_call.1} parent=39 // pred_fallthru
          _
      $region40: #{tpu_custom_call.1} parent=5 // pred_fallthru
        _
      %p493 = scmp.le.s32.totalorder 2, %s14
      // Predicated region
      $region45: #{tpu_custom_call.1} parent=5 // pred_check
        %p494 = pneg %p493
      $region46: #{tpu_custom_call.1} parent=5 // pred_check_branch
        %496 = sbr.rel (%p494) target = $region48
      $region47: #{tpu_custom_call.1} parent=5 // pred_region
        %s497 = ssub.s32 %s14, 2
        // Predicated region
        $region49: #{tpu_custom_call.1} parent=47 // pred_check
          %p498 = pneg %p169
        $region50: #{tpu_custom_call.1} parent=47 // pred_check_branch
          %500 = sbr.rel (%p498) target = $region52
        $region51: #{tpu_custom_call.1} parent=47 // pred_region
          %s501 = sand.u32 %s154, 1
          %s502 = scalar_lea.sflag [#allocation4], %s501
          %s503 = sand.u32 %s154, 1
          %s504 = smul.addr %s503, 8
          %s505 = scalar_lea.vmem [#allocation3], %s504
          %506 = dma.done %s502, 128
        $region52: #{tpu_custom_call.1} parent=47 // pred_fallthru
          _
      $region48: #{tpu_custom_call.1} parent=5 // pred_fallthru
        _
    $region6: #{tpu_custom_call.1} parent=1 // loop_footer
      %s18 = sadd.s32 1, %s14
    $region7: #{tpu_custom_call.1} parent=1 // loop_footer_branch
      %13 = sbr.rel target = $region3
    $region8: #{tpu_custom_call.1} parent=1 // loop_exit
      _
    %507 = vsyncpa [#allocation4], 1
    %s508 = scalar_lea.sflag [#allocation4], 1
    %509 = vsyncpa %s508, 1

</llo_original>
